<compile_context>
chip_gen: v5e
topology: v5e:2x2
jax: 0.10.0
libtpu: 0.0.40
codegen_flags: <defaults>
</compile_context>

<pallas_src>
import functools
import itertools

import jax
import jax.numpy as jnp
import numpy as np
from jax.experimental import pallas as pl
from jax.experimental.pallas import tpu as pltpu


def _round_up(x, m):
    return ((x + m - 1) // m) * m


def _vmem_capacity_bytes():
    """Physical VMEM of the current TPU generation (conservative fallback)."""
    try:
        return int(pltpu.get_tpu_info().vmem_capacity_bytes)
    except Exception:
        return 64 << 20  # assume the smallest (v7x: 64 MiB per TensorCore)


def _plan(bs, n_src, tlen, improvement):
    """Pick (batch_tile, time_chunk, vmem_limit_bytes) for the stats kernel."""
    cap = _vmem_capacity_bytes()
    # Lane-aligned time chunk (~8K lanes -> ~256 KB per padded source row).
    chunk = min(_round_up(tlen, 128), 8192)
    # Per-batch-element footprint of one chunk step: double-buffered inputs
    # plus elementwise temporaries.  The n_src (second-minor) dim pads to 8
    # sublanes in VMEM, hence the factor 8 (NOT n_src).
    slabs = 12 if improvement else 8
    budget = min(int(cap * 0.45), 40 << 20)
    per_b = slabs * 8 * chunk * 4
    while per_b > budget and chunk > 512:
        chunk = max(512, chunk // 2)
        per_b = slabs * 8 * chunk * 4
    # Batch tile: fit the budget, keep per-step work large enough to amortize
    # the ~0.35us/step overhead, and keep >= 2 parallel grid steps so v7x's
    # two TensorCores both get work.
    bt = max(1, min(bs, budget // per_b, max(1, 32768 // chunk)))
    if bs >= 2:
        bt = min(bt, max(1, bs // 2))
    while bs % bt:  # keep the batch grid exact
        bt -= 1
    vmem_limit = int(min(max(bt * per_b + (8 << 20), 24 << 20),
                         int(cap * 0.75), 96 << 20))
    return bt, chunk, vmem_limit


# ---------------------------------------------------------------------------
# Pairwise SI-SNR statistics kernel (VPU dots, T-chunk reduction axis)
# ---------------------------------------------------------------------------
def _sisnr_stats_kernel(*refs, n_src, tlen, chunk, eps, zero_mean, improvement,
                        lanes):
    if improvement:
        pr_ref, t_ref, mix_ref, out_ref, acc_ref, acc2_ref = refs
    else:
        pr_ref, t_ref, out_ref, acc_ref = refs

    k = pl.program_id(1)
    nk = pl.num_programs(1)
    bt = pr_ref.shape[0]

    @pl.when(k == 0)
    def _init():
        acc_ref[...] = jnp.zeros_like(acc_ref)
        if improvement:
            acc2_ref[...] = jnp.zeros_like(acc2_ref)

    p = pr_ref[...]                                    # (bt, n_src, chunk)
    t = t_ref[...]                                     # (bt, n_src, chunk)
    if improvement:
        m = mix_ref[...]                               # (bt, 1, chunk)

    if tlen % chunk:
        # Ragged tail: the out-of-bounds lanes of the last chunk are
        # unspecified -> mask them to zero (exact for every dot / sum).
        lane = jax.lax.broadcasted_iota(jnp.int32, (1, 1, chunk), 2)
        valid = lane < (tlen - k * chunk)
        p = jnp.where(valid, p, 0.0)
        t = jnp.where(valid, t, 0.0)
        if improvement:
            m = jnp.where(valid, m, 0.0)

    # Accumulated statistics (one lane-column each, rows as noted):
    #   cols [0, n_src): G[:, j, i] = <p_j, t_i>      rows = pred j
    #   col  n_src     : pp_j = <p_j, p_j>            rows = pred j
    #   col  n_src + 1 : tt_i = <t_i, t_i>            rows = target i
    #   (+2, +3)       : sum(p_j), sum(t_i)           only when zero_mean
    #   (+last)        : gm_i = <mix, t_i>            only when improvement
    pieces = [jnp.sum(p * t[:, i:i + 1, :], axis=-1, keepdims=True)
              for i in range(n_src)]
    pieces.append(jnp.sum(p * p, axis=-1, keepdims=True))
    pieces.append(jnp.sum(t * t, axis=-1, keepdims=True))
    if zero_mean:
        pieces.append(jnp.sum(p, axis=-1, keepdims=True))
        pieces.append(jnp.sum(t, axis=-1, keepdims=True))
    if improvement:
        pieces.append(jnp.sum(m * t, axis=-1, keepdims=True))
    acc_ref[...] += jnp.concatenate(pieces, axis=-1)   # (bt, n_src, C1)

    if improvement:
        p2 = [jnp.sum(m * m, axis=-1, keepdims=True)]  # mm
        if zero_mean:
            p2.append(jnp.sum(m, axis=-1, keepdims=True))  # sum(mix)
        acc2_ref[...] += (jnp.concatenate(p2, axis=-1) if len(p2) > 1 else p2[0])

    @pl.when(k == nk - 1)
    def _finalize():
        acc = acc_ref[...]
        G = acc[:, :, 0:n_src]                         # (bt, n_src, n_src)
        pp = acc[:, :, n_src:n_src + 1]                # (bt, n_src, 1)
        tt = acc[:, :, n_src + 1:n_src + 2]            # (bt, n_src, 1)
        c = n_src + 2
        inv_len = 1.0 / float(tlen)
        if zero_mean:
            sp = acc[:, :, c:c + 1]
            st = acc[:, :, c + 1:c + 2]
            c += 2
            # centered moments: <x - x̄, y - ȳ> = <x, y> - sum(x) sum(y) / T
            pp = pp - sp * sp * inv_len
            tt = tt - st * st * inv_len
        if improvement:
            gm = acc[:, :, c:c + 1]                    # (bt, n_src, 1)
            a2 = acc2_ref[...]
            mm = a2[:, :, 0:1]                         # (bt, 1, 1)
            if zero_mean:
                sm = a2[:, :, 1:2]
                mm = mm - sm * sm * inv_len

        def _sisnr(g, pw, tt_i):
            inv_tt = 1.0 / (tt_i + eps)
            g2 = g * g
            num = g2 * tt_i * (inv_tt * inv_tt)        # ||s_t||^2
            # ||e_t||^2 >= 0 mathematically; clamp guards f32 cancellation.
            den = jnp.maximum(pw - 2.0 * g2 * inv_tt + num, 0.0) + eps
            return 10.0 * jnp.log10(num / den)         # single log10

        # pred block: column i = SI-SNR(pred_j, target_i) for all j
        cols = []
        for i in range(n_src):
            g_i = G[:, :, i:i + 1]                     # (bt, n_src, 1)
            tt_i = tt[:, i:i + 1, :]                   # (bt, 1, 1)
            if zero_mean:
                g_i = g_i - sp * st[:, i:i + 1, :] * inv_len
            cols.append(_sisnr(g_i, pp, tt_i))
        if lanes > n_src:
            cols.append(jnp.zeros((bt, n_src, lanes - n_src), jnp.float32))
        pred_block = jnp.concatenate(cols, axis=-1)    # (bt, n_src, lanes)

        if improvement:
            mcols = []
            for i in range(n_src):
                g_i = gm[:, i:i + 1, :]                # (bt, 1, 1)
                tt_i = tt[:, i:i + 1, :]
                if zero_mean:
                    g_i = g_i - sm * st[:, i:i + 1, :] * inv_len
                mcols.append(_sisnr(g_i, mm, tt_i))
            if lanes > n_src:
                mcols.append(jnp.zeros((bt, 1, lanes - n_src), jnp.float32))
            mix_row = jnp.concatenate(mcols, axis=-1)  # (bt, 1, lanes)
            out_ref[:, 0:n_src, :] = pred_block
            out_ref[:, n_src:n_src + 1, :] = mix_row
        else:
            out_ref[...] = pred_block


def pairwise_sisnr(pr, t, mix=None, *, eps, zero_mean):
    """Pairwise SI-SNR matrix S[b, j, i] = SI-SNR(pred_{b,j}, target_{b,i}).

    If `mix` (bs, 1, T) is given, an extra row j = n_src holds
    SI-SNR(mix_b, target_{b,i}).  Returns (bs, n_rows, n_src) float32.
    Inputs are read raw from HBM (no padding / zero-mean passes).
    """
    bs, n_src, tlen = pr.shape
    improvement = mix is not None
    n_rows = n_src + (1 if improvement else 0)
    bt, chunk, vmem_limit = _plan(bs, n_src, tlen, improvement)
    nk = -(-tlen // chunk)
    lanes = _round_up(max(n_src, 128), 128)
    n_cols = n_src + 2 + (2 if zero_mean else 0) + (1 if improvement else 0)

    kernel = functools.partial(
        _sisnr_stats_kernel, n_src=n_src, tlen=tlen, chunk=chunk,
        eps=float(eps), zero_mean=zero_mean, improvement=improvement,
        lanes=lanes)

    in_specs = [pl.BlockSpec((bt, n_src, chunk), lambda b, k: (b, 0, k)),
                pl.BlockSpec((bt, n_src, chunk), lambda b, k: (b, 0, k))]
    inputs = [pr, t]
    scratch = [pltpu.VMEM((bt, n_src, n_cols), jnp.float32)]
    if improvement:
        in_specs.append(pl.BlockSpec((bt, 1, chunk), lambda b, k: (b, 0, k)))
        inputs.append(mix)
        scratch.append(pltpu.VMEM((bt, 1, 2 if zero_mean else 1), jnp.float32))

    out = pl.pallas_call(
        kernel,
        out_shape=jax.ShapeDtypeStruct((bs, n_rows, lanes), jnp.float32),
        grid=(bs // bt, nk),
        in_specs=in_specs,
        out_specs=pl.BlockSpec((bt, n_rows, lanes), lambda b, k: (b, 0, 0)),
        scratch_shapes=scratch,
        compiler_params=pltpu.CompilerParams(
            dimension_semantics=("parallel", "arbitrary"),
            vmem_limit_bytes=vmem_limit),
    )(*inputs)
    return out[:, :, :n_src]


# ---------------------------------------------------------------------------
# Module (forward pass only)
# ---------------------------------------------------------------------------
class HigherOrderPermInvariantSISDR:
    """JAX/Pallas port of the PyTorch module (forward pass only)."""

    def __init__(self, batch_size=None, zero_mean=False, n_sources=None,
                 backward_loss=True, improvement=False,
                 return_individual_results=False, var_weight=0.0):
        self.bs = batch_size
        self.perform_zero_mean = zero_mean
        self.backward_loss = backward_loss
        self.permutations = list(itertools.permutations(range(n_sources)))
        self.improvement = improvement
        self.n_sources = n_sources
        self.return_individual_results = return_individual_results
        self.var_weight = var_weight

    def __call__(self, pr_batch, t_batch, epoch_count, classes_indexes,
                 eps=1e-09, initial_mixtures=None, mix_reweight=False):
        pr = jnp.asarray(pr_batch, jnp.float32)
        t = jnp.asarray(t_batch, jnp.float32)
        mix = (None if initial_mixtures is None
               else jnp.asarray(initial_mixtures, jnp.float32))

        # normalize_input: length truncation only; the zero-mean is applied
        # INSIDE the kernel (centered-moment identity) -> no extra HBM pass.
        min_len = min(pr.shape[-1], t.shape[-1])
        if mix is not None:
            min_len = min(min_len, mix.shape[-1])
            mix = mix[:, :, :min_len]
        pr = pr[:, :, :min_len]
        t = t[:, :, :min_len]

        bs, n_src = pr.shape[0], self.n_sources
        if self.improvement and mix is None:
            raise ValueError("improvement=True requires initial_mixtures")

        # Hot path: one fused Pallas kernel produces the full pairwise SI-SNR
        # matrix (plus the mixture row when improvement=True).
        S_aug = pairwise_sisnr(pr, t, mix if self.improvement else None,
                               eps=eps, zero_mean=self.perform_zero_mean)
        S = S_aug[:, :n_src, :]                        # (bs, n_src, n_src)

        # all_sisnrs[b, i, p] = SI-SNR(pred_{perm_p[i]}, target_i)
        perm_arr = jnp.array(self.permutations, dtype=jnp.int32)
        pred_idx = jnp.transpose(perm_arr)             # (n_src, n_perms)
        tgt_idx = jnp.arange(n_src, dtype=jnp.int32)[:, None]
        all_sisnrs = S[:, pred_idx, tgt_idx]           # (bs, n_src, n_perms)

        best_perm_idxs = jnp.argmax(all_sisnrs.mean(axis=-2), axis=-1)   # (bs,)
        gather_idx = jnp.broadcast_to(best_perm_idxs[:, None, None],
                                      (bs, n_src, 1))
        best_sisdr = jnp.take_along_axis(all_sisnrs, gather_idx, axis=-1)

        if self.improvement:
            base_sisdr = S_aug[:, n_src, :]            # (bs, n_src)
            best_sisdr = best_sisdr - base_sisdr[..., None]

        sources_sisdr = best_sisdr[..., 0]             # (bs, n_src)

        if mix_reweight:
            T1, T2 = (1.0, 0.0)
            Tw = jnp.ones(sources_sisdr.shape, jnp.float32)
            Tw = Tw.at[:, 0].set(T1).at[:, 1].set(T2)
            new_weights = jax.nn.softmax(Tw.reshape(-1))
            sources_sisdr = new_weights * sources_sisdr.reshape(-1)
        else:
            classes_weights = 3.0 * jnp.asarray(classes_indexes, jnp.float32)
            new_weights = jax.nn.softmax(classes_weights.reshape(-1))
            new_weights = jax.lax.stop_gradient(new_weights)
            sources_sisdr = new_weights * sources_sisdr.reshape(-1)

        if not self.return_individual_results:
            sources_sisdr = sources_sisdr.sum()
        if self.backward_loss:
            return -sources_sisdr
        return best_sisdr.reshape(-1)


# ---------------------------------------------------------------------------
# Pure-JAX reference (residual-based, mirrors the PyTorch forward)
# ---------------------------------------------------------------------------
def _reference_loss(pr, t, classes_indexes, perms, eps=1e-09,
                    initial_mixtures=None, zero_mean=False):
    def dot(x, y):
        return jnp.sum(x * y, axis=-1, keepdims=True)

    if zero_mean:
        pr = pr - jnp.mean(pr, axis=-1, keepdims=True)
        t = t - jnp.mean(t, axis=-1, keepdims=True)
        if initial_mixtures is not None:
            initial_mixtures = initial_mixtures - jnp.mean(
                initial_mixtures, axis=-1, keepdims=True)

    bs, n_src, _ = pr.shape
    t_t = dot(t, t)
    sisnr_l = []
    for perm in perms:
        p = pr[:, list(perm), :]
        s_t = dot(p, t) / (t_t + eps) * t
        e_t = p - s_t
        sisnr_l.append(10.0 * jnp.log10(dot(s_t, s_t) / (dot(e_t, e_t) + eps)))
    all_sisnrs = jnp.concatenate(sisnr_l, -1)
    best = jnp.argmax(all_sisnrs.mean(-2), -1)
    best_sisdr = jnp.take_along_axis(
        all_sisnrs, jnp.broadcast_to(best[:, None, None], (bs, n_src, 1)),
        axis=-1)
    if initial_mixtures is not None:
        mix = jnp.tile(initial_mixtures, (1, n_src, 1))
        s_t = dot(mix, t) / (t_t + eps) * t
        e_t = mix - s_t
        base = 10.0 * jnp.log10(dot(s_t, s_t) / (dot(e_t, e_t) + eps))
        best_sisdr = best_sisdr - base
    src = best_sisdr[..., 0]
    w = jax.nn.softmax((3.0 * classes_indexes).reshape(-1))
    return -(w * src.reshape(-1)).sum()


if __name__ == "__main__":
    root = jax.random.PRNGKey(0)
    k1, k2, k3, k4, k5, k6, k7 = jax.random.split(root, 7)

    # --- Test 1: default path (permutation-invariant backward loss) ---------
    bs, n_src, T = 2, 3, 500            # T deliberately not a multiple of 128
    pr = jax.random.normal(k1, (bs, n_src, T), jnp.float32)
    tb = jax.random.normal(k2, (bs, n_src, T), jnp.float32)
    classes_indexes = jax.random.uniform(k3, (bs, n_src), jnp.float32)

    mod = HigherOrderPermInvariantSISDR(batch_size=bs, n_sources=n_src)
    loss = jax.block_until_ready(
        mod(pr, tb, epoch_count=0, classes_indexes=classes_indexes))
    ref = _reference_loss(pr, tb, classes_indexes, mod.permutations)
    np.testing.assert_allclose(np.asarray(loss), np.asarray(ref),
                               rtol=1e-4, atol=1e-4)

    # --- Test 2: zero-mean + SI-SDR improvement, multi-chunk ragged T axis ---
    bs2, n_src2, T2 = 4, 2, 9000        # two 8192-lane chunks, ragged tail
    pr2 = jax.random.normal(k4, (bs2, n_src2, T2), jnp.float32)
    tb2 = jax.random.normal(k5, (bs2, n_src2, T2), jnp.float32)
    ci2 = jax.random.uniform(k6, (bs2, n_src2), jnp.float32)
    mix2 = jnp.sum(tb2, axis=1, keepdims=True) + 0.1 * jax.random.normal(
        k7, (bs2, 1, T2), jnp.float32)

    mod2 = HigherOrderPermInvariantSISDR(batch_size=bs2, n_sources=n_src2,
                                         zero_mean=True, improvement=True)
    loss2 = jax.block_until_ready(
        mod2(pr2, tb2, epoch_count=0, classes_indexes=ci2,
             initial_mixtures=mix2))
    ref2 = _reference_loss(pr2, tb2, ci2, mod2.permutations,
                           initial_mixtures=mix2, zero_mean=True)
    np.testing.assert_allclose(np.asarray(loss2), np.asarray(ref2),
                               rtol=1e-4, atol=1e-4)

    print("KERNEL_OK")
</pallas_src>

<mosaic_0001>
module attributes {stable_mosaic.version = 11 : i64} {
  func.func @_sisnr_stats_kernel(%arg0: i32, %arg1: i32, %arg2: memref<1x3x512xf32, #tpu.memory_space<vmem>>, %arg3: memref<1x3x512xf32, #tpu.memory_space<vmem>>, %arg4: memref<1x3x128xf32, #tpu.memory_space<vmem>>, %arg5: memref<1x3x5xf32, #tpu.memory_space<vmem>>) attributes {dimension_semantics = [#tpu.dimension_semantics<parallel>, #tpu.dimension_semantics<arbitrary>], iteration_bounds = array<i64: 2, 1>, scalar_prefetch = 0 : i64, scratch_operands = 1 : i64, tpu.core_type = #tpu.core_type<tc>, window_params = [{transform_indices = @transform_0, window_bounds = array<i64: 1, 3, 512>}, {transform_indices = @transform_1, window_bounds = array<i64: 1, 3, 512>}, {transform_indices = @transform_2, window_bounds = array<i64: 1, 3, 128>}]} {
    %c0_i32 = arith.constant 0 : i32
    %0 = arith.cmpi eq, %arg1, %c0_i32 : i32
    %1 = arith.extui %0 : i1 to i32
    %c0_i32_0 = arith.constant 0 : i32
    %2 = arith.cmpi ne, %1, %c0_i32_0 : i32
    scf.if %2 {
      %cst_20 = arith.constant 0.000000e+00 : f32
      %46 = vector.broadcast %cst_20 : f32 to vector<1x3x5xf32>
      %c0_21 = arith.constant 0 : index
      %c0_22 = arith.constant 0 : index
      %c0_23 = arith.constant 0 : index
      %47 = vector.load %arg5[%c0_21, %c0_22, %c0_23] : memref<1x3x5xf32, #tpu.memory_space<vmem>>, vector<1x3x5xf32>
      tpu.vector_store %arg5[%c0_21, %c0_22, %c0_23], %46 {strides = array<i32>} : memref<1x3x5xf32, #tpu.memory_space<vmem>>, vector<1x3x5xf32>,
    } else {
    }
    %c0 = arith.constant 0 : index
    %c0_1 = arith.constant 0 : index
    %c0_2 = arith.constant 0 : index
    %3 = vector.load %arg2[%c0, %c0_1, %c0_2] : memref<1x3x512xf32, #tpu.memory_space<vmem>>, vector<1x3x512xf32>
    %c0_3 = arith.constant 0 : index
    %c0_4 = arith.constant 0 : index
    %c0_5 = arith.constant 0 : index
    %4 = vector.load %arg3[%c0_3, %c0_4, %c0_5] : memref<1x3x512xf32, #tpu.memory_space<vmem>>, vector<1x3x512xf32>
    %5 = tpu.iota {dimensions = array<i32: 2>} : vector<1x1x512xi32>
    %c512_i32 = arith.constant 512 : i32
    %6 = arith.muli %arg1, %c512_i32 : i32
    %c500_i32 = arith.constant 500 : i32
    %7 = arith.subi %c500_i32, %6 : i32
    %8 = vector.broadcast %7 : i32 to vector<1x1x512xi32>
    %9 = arith.cmpi slt, %5, %8 : vector<1x1x512xi32>
    %cst = arith.constant 0.000000e+00 : f32
    %10 = vector.shape_cast %9 : vector<1x1x512xi1> to vector<1x1x512xi1>
    %11 = vector.broadcast %10 : vector<1x1x512xi1> to vector<1x3x512xi1>
    %12 = vector.broadcast %cst : f32 to vector<1x3x512xf32>
    %13 = arith.select %11, %3, %12 : vector<1x3x512xi1>, vector<1x3x512xf32>
    %cst_6 = arith.constant 0.000000e+00 : f32
    %14 = vector.shape_cast %9 : vector<1x1x512xi1> to vector<1x1x512xi1>
    %15 = vector.broadcast %14 : vector<1x1x512xi1> to vector<1x3x512xi1>
    %16 = vector.broadcast %cst_6 : f32 to vector<1x3x512xf32>
    %17 = arith.select %15, %4, %16 : vector<1x3x512xi1>, vector<1x3x512xf32>
    %18 = vector.extract_strided_slice %17 {offsets = [0, 0, 0], sizes = [1, 1, 512], strides = [1, 1, 1]} : vector<1x3x512xf32> to vector<1x1x512xf32>
    %19 = vector.broadcast %18 : vector<1x1x512xf32> to vector<1x3x512xf32>
    %20 = arith.mulf %13, %19 : vector<1x3x512xf32>
    %cst_7 = arith.constant dense<0.000000e+00> : vector<1x3xf32>
    %21 = vector.multi_reduction <add>, %20, %cst_7 [2] : vector<1x3x512xf32> to vector<1x3xf32>
    %22 = vector.shape_cast %21 : vector<1x3xf32> to vector<1x3x1xf32>
    %23 = vector.extract_strided_slice %17 {offsets = [0, 1, 0], sizes = [1, 1, 512], strides = [1, 1, 1]} : vector<1x3x512xf32> to vector<1x1x512xf32>
    %24 = vector.broadcast %23 : vector<1x1x512xf32> to vector<1x3x512xf32>
    %25 = arith.mulf %13, %24 : vector<1x3x512xf32>
    %cst_8 = arith.constant dense<0.000000e+00> : vector<1x3xf32>
    %26 = vector.multi_reduction <add>, %25, %cst_8 [2] : vector<1x3x512xf32> to vector<1x3xf32>
    %27 = vector.shape_cast %26 : vector<1x3xf32> to vector<1x3x1xf32>
    %28 = vector.extract_strided_slice %17 {offsets = [0, 2, 0], sizes = [1, 1, 512], strides = [1, 1, 1]} : vector<1x3x512xf32> to vector<1x1x512xf32>
    %29 = vector.broadcast %28 : vector<1x1x512xf32> to vector<1x3x512xf32>
    %30 = arith.mulf %13, %29 : vector<1x3x512xf32>
    %cst_9 = arith.constant dense<0.000000e+00> : vector<1x3xf32>
    %31 = vector.multi_reduction <add>, %30, %cst_9 [2] : vector<1x3x512xf32> to vector<1x3xf32>
    %32 = vector.shape_cast %31 : vector<1x3xf32> to vector<1x3x1xf32>
    %33 = arith.mulf %13, %13 : vector<1x3x512xf32>
    %cst_10 = arith.constant dense<0.000000e+00> : vector<1x3xf32>
    %34 = vector.multi_reduction <add>, %33, %cst_10 [2] : vector<1x3x512xf32> to vector<1x3xf32>
    %35 = vector.shape_cast %34 : vector<1x3xf32> to vector<1x3x1xf32>
    %36 = arith.mulf %17, %17 : vector<1x3x512xf32>
    %cst_11 = arith.constant dense<0.000000e+00> : vector<1x3xf32>
    %37 = vector.multi_reduction <add>, %36, %cst_11 [2] : vector<1x3x512xf32> to vector<1x3xf32>
    %38 = vector.shape_cast %37 : vector<1x3xf32> to vector<1x3x1xf32>
    %c0_12 = arith.constant 0 : index
    %c0_13 = arith.constant 0 : index
    %c0_14 = arith.constant 0 : index
    %39 = vector.load %arg5[%c0_12, %c0_13, %c0_14] : memref<1x3x5xf32, #tpu.memory_space<vmem>>, vector<1x3x5xf32>
    %40 = tpu.concatenate %22, %27, %32, %35, %38 in 2 : vector<1x3x1xf32>, vector<1x3x1xf32>, vector<1x3x1xf32>, vector<1x3x1xf32>, vector<1x3x1xf32> -> vector<1x3x5xf32>
    %41 = arith.addf %39, %40 : vector<1x3x5xf32>
    %c0_15 = arith.constant 0 : index
    %c0_16 = arith.constant 0 : index
    %c0_17 = arith.constant 0 : index
    %42 = vector.load %arg5[%c0_15, %c0_16, %c0_17] : memref<1x3x5xf32, #tpu.memory_space<vmem>>, vector<1x3x5xf32>
    tpu.vector_store %arg5[%c0_15, %c0_16, %c0_17], %41 {strides = array<i32>} : memref<1x3x5xf32, #tpu.memory_space<vmem>>, vector<1x3x5xf32>,
    %c0_i32_18 = arith.constant 0 : i32
    %43 = arith.cmpi eq, %arg1, %c0_i32_18 : i32
    %44 = arith.extui %43 : i1 to i32
    %c0_i32_19 = arith.constant 0 : i32
    %45 = arith.cmpi ne, %44, %c0_i32_19 : i32
    scf.if %45 {
      %c0_20 = arith.constant 0 : index
      %c0_21 = arith.constant 0 : index
      %c0_22 = arith.constant 0 : index
      %46 = vector.load %arg5[%c0_20, %c0_21, %c0_22] : memref<1x3x5xf32, #tpu.memory_space<vmem>>, vector<1x3x5xf32>
      %47 = vector.extract_strided_slice %46 {offsets = [0, 0, 0], sizes = [1, 3, 3], strides = [1, 1, 1]} : vector<1x3x5xf32> to vector<1x3x3xf32>
      %48 = vector.extract_strided_slice %46 {offsets = [0, 0, 3], sizes = [1, 3, 1], strides = [1, 1, 1]} : vector<1x3x5xf32> to vector<1x3x1xf32>
      %49 = vector.extract_strided_slice %46 {offsets = [0, 0, 4], sizes = [1, 3, 1], strides = [1, 1, 1]} : vector<1x3x5xf32> to vector<1x3x1xf32>
      %50 = vector.extract_strided_slice %47 {offsets = [0, 0, 0], sizes = [1, 3, 1], strides = [1, 1, 1]} : vector<1x3x3xf32> to vector<1x3x1xf32>
      %51 = vector.extract_strided_slice %49 {offsets = [0, 0, 0], sizes = [1, 1, 1], strides = [1, 1, 1]} : vector<1x3x1xf32> to vector<1x1x1xf32>
      %cst_23 = arith.constant 9.99999971E-10 : f32
      %52 = vector.broadcast %cst_23 : f32 to vector<1x1x1xf32>
      %53 = arith.addf %51, %52 : vector<1x1x1xf32>
      %cst_24 = arith.constant 1.000000e+00 : f32
      %54 = vector.broadcast %cst_24 : f32 to vector<1x1x1xf32>
      %55 = arith.divf %54, %53 : vector<1x1x1xf32>
      %56 = arith.mulf %50, %50 : vector<1x3x1xf32>
      %57 = vector.broadcast %51 : vector<1x1x1xf32> to vector<1x3x1xf32>
      %58 = arith.mulf %56, %57 : vector<1x3x1xf32>
      %59 = arith.mulf %55, %55 : vector<1x1x1xf32>
      %60 = vector.broadcast %59 : vector<1x1x1xf32> to vector<1x3x1xf32>
      %61 = arith.mulf %58, %60 : vector<1x3x1xf32>
      %cst_25 = arith.constant 2.000000e+00 : f32
      %62 = vector.broadcast %cst_25 : f32 to vector<1x3x1xf32>
      %63 = arith.mulf %62, %56 : vector<1x3x1xf32>
      %64 = vector.broadcast %55 : vector<1x1x1xf32> to vector<1x3x1xf32>
      %65 = arith.mulf %63, %64 : vector<1x3x1xf32>
      %66 = arith.subf %48, %65 : vector<1x3x1xf32>
      %67 = arith.addf %66, %61 : vector<1x3x1xf32>
      %cst_26 = arith.constant 0.000000e+00 : f32
      %68 = vector.broadcast %cst_26 : f32 to vector<1x3x1xf32>
      %69 = arith.maximumf %67, %68 : vector<1x3x1xf32>
      %cst_27 = arith.constant 9.99999971E-10 : f32
      %70 = vector.broadcast %cst_27 : f32 to vector<1x3x1xf32>
      %71 = arith.addf %69, %70 : vector<1x3x1xf32>
      %72 = arith.divf %61, %71 : vector<1x3x1xf32>
      %73 = math.log %72 : vector<1x3x1xf32>
      %cst_28 = arith.constant 0.434294492 : f32
      %74 = vector.broadcast %cst_28 : f32 to vector<1x3x1xf32>
      %75 = arith.mulf %73, %74 : vector<1x3x1xf32>
      %cst_29 = arith.constant 1.000000e+01 : f32
      %76 = vector.broadcast %cst_29 : f32 to vector<1x3x1xf32>
      %77 = arith.mulf %76, %75 : vector<1x3x1xf32>
      %78 = vector.extract_strided_slice %47 {offsets = [0, 0, 1], sizes = [1, 3, 1], strides = [1, 1, 1]} : vector<1x3x3xf32> to vector<1x3x1xf32>
      %79 = vector.extract_strided_slice %49 {offsets = [0, 1, 0], sizes = [1, 1, 1], strides = [1, 1, 1]} : vector<1x3x1xf32> to vector<1x1x1xf32>
      %cst_30 = arith.constant 9.99999971E-10 : f32
      %80 = vector.broadcast %cst_30 : f32 to vector<1x1x1xf32>
      %81 = arith.addf %79, %80 : vector<1x1x1xf32>
      %cst_31 = arith.constant 1.000000e+00 : f32
      %82 = vector.broadcast %cst_31 : f32 to vector<1x1x1xf32>
      %83 = arith.divf %82, %81 : vector<1x1x1xf32>
      %84 = arith.mulf %78, %78 : vector<1x3x1xf32>
      %85 = vector.broadcast %79 : vector<1x1x1xf32> to vector<1x3x1xf32>
      %86 = arith.mulf %84, %85 : vector<1x3x1xf32>
      %87 = arith.mulf %83, %83 : vector<1x1x1xf32>
      %88 = vector.broadcast %87 : vector<1x1x1xf32> to vector<1x3x1xf32>
      %89 = arith.mulf %86, %88 : vector<1x3x1xf32>
      %cst_32 = arith.constant 2.000000e+00 : f32
      %90 = vector.broadcast %cst_32 : f32 to vector<1x3x1xf32>
      %91 = arith.mulf %90, %84 : vector<1x3x1xf32>
      %92 = vector.broadcast %83 : vector<1x1x1xf32> to vector<1x3x1xf32>
      %93 = arith.mulf %91, %92 : vector<1x3x1xf32>
      %94 = arith.subf %48, %93 : vector<1x3x1xf32>
      %95 = arith.addf %94, %89 : vector<1x3x1xf32>
      %cst_33 = arith.constant 0.000000e+00 : f32
      %96 = vector.broadcast %cst_33 : f32 to vector<1x3x1xf32>
      %97 = arith.maximumf %95, %96 : vector<1x3x1xf32>
      %cst_34 = arith.constant 9.99999971E-10 : f32
      %98 = vector.broadcast %cst_34 : f32 to vector<1x3x1xf32>
      %99 = arith.addf %97, %98 : vector<1x3x1xf32>
      %100 = arith.divf %89, %99 : vector<1x3x1xf32>
      %101 = math.log %100 : vector<1x3x1xf32>
      %cst_35 = arith.constant 0.434294492 : f32
      %102 = vector.broadcast %cst_35 : f32 to vector<1x3x1xf32>
      %103 = arith.mulf %101, %102 : vector<1x3x1xf32>
      %cst_36 = arith.constant 1.000000e+01 : f32
      %104 = vector.broadcast %cst_36 : f32 to vector<1x3x1xf32>
      %105 = arith.mulf %104, %103 : vector<1x3x1xf32>
      %106 = vector.extract_strided_slice %47 {offsets = [0, 0, 2], sizes = [1, 3, 1], strides = [1, 1, 1]} : vector<1x3x3xf32> to vector<1x3x1xf32>
      %107 = vector.extract_strided_slice %49 {offsets = [0, 2, 0], sizes = [1, 1, 1], strides = [1, 1, 1]} : vector<1x3x1xf32> to vector<1x1x1xf32>
      %cst_37 = arith.constant 9.99999971E-10 : f32
      %108 = vector.broadcast %cst_37 : f32 to vector<1x1x1xf32>
      %109 = arith.addf %107, %108 : vector<1x1x1xf32>
      %cst_38 = arith.constant 1.000000e+00 : f32
      %110 = vector.broadcast %cst_38 : f32 to vector<1x1x1xf32>
      %111 = arith.divf %110, %109 : vector<1x1x1xf32>
      %112 = arith.mulf %106, %106 : vector<1x3x1xf32>
      %113 = vector.broadcast %107 : vector<1x1x1xf32> to vector<1x3x1xf32>
      %114 = arith.mulf %112, %113 : vector<1x3x1xf32>
      %115 = arith.mulf %111, %111 : vector<1x1x1xf32>
      %116 = vector.broadcast %115 : vector<1x1x1xf32> to vector<1x3x1xf32>
      %117 = arith.mulf %114, %116 : vector<1x3x1xf32>
      %cst_39 = arith.constant 2.000000e+00 : f32
      %118 = vector.broadcast %cst_39 : f32 to vector<1x3x1xf32>
      %119 = arith.mulf %118, %112 : vector<1x3x1xf32>
      %120 = vector.broadcast %111 : vector<1x1x1xf32> to vector<1x3x1xf32>
      %121 = arith.mulf %119, %120 : vector<1x3x1xf32>
      %122 = arith.subf %48, %121 : vector<1x3x1xf32>
      %123 = arith.addf %122, %117 : vector<1x3x1xf32>
      %cst_40 = arith.constant 0.000000e+00 : f32
      %124 = vector.broadcast %cst_40 : f32 to vector<1x3x1xf32>
      %125 = arith.maximumf %123, %124 : vector<1x3x1xf32>
      %cst_41 = arith.constant 9.99999971E-10 : f32
      %126 = vector.broadcast %cst_41 : f32 to vector<1x3x1xf32>
      %127 = arith.addf %125, %126 : vector<1x3x1xf32>
      %128 = arith.divf %117, %127 : vector<1x3x1xf32>
      %129 = math.log %128 : vector<1x3x1xf32>
      %cst_42 = arith.constant 0.434294492 : f32
      %130 = vector.broadcast %cst_42 : f32 to vector<1x3x1xf32>
      %131 = arith.mulf %129, %130 : vector<1x3x1xf32>
      %cst_43 = arith.constant 1.000000e+01 : f32
      %132 = vector.broadcast %cst_43 : f32 to vector<1x3x1xf32>
      %133 = arith.mulf %132, %131 : vector<1x3x1xf32>
      %cst_44 = arith.constant 0.000000e+00 : f32
      %134 = vector.broadcast %cst_44 : f32 to vector<1x3x125xf32>
      %135 = tpu.concatenate %77, %105, %133, %134 in 2 : vector<1x3x1xf32>, vector<1x3x1xf32>, vector<1x3x1xf32>, vector<1x3x125xf32> -> vector<1x3x128xf32>
      %c0_45 = arith.constant 0 : index
      %c0_46 = arith.constant 0 : index
      %c0_47 = arith.constant 0 : index
      %136 = vector.load %arg4[%c0_45, %c0_46, %c0_47] : memref<1x3x128xf32, #tpu.memory_space<vmem>>, vector<1x3x128xf32>
      tpu.vector_store %arg4[%c0_45, %c0_46, %c0_47], %135 {strides = array<i32>} : memref<1x3x128xf32, #tpu.memory_space<vmem>>, vector<1x3x128xf32>,
    } else {
    }
    return
  }
  func.func @transform_0(%arg0: i32, %arg1: i32) -> (i32, i32, i32) {
    %c0_i32 = arith.constant 0 : i32
    %c0_i32_0 = arith.constant 0 : i32
    return %arg0, %c0_i32, %arg1 : i32, i32, i32
  }
  func.func @transform_1(%arg0: i32, %arg1: i32) -> (i32, i32, i32) {
    %c0_i32 = arith.constant 0 : i32
    %c0_i32_0 = arith.constant 0 : i32
    return %arg0, %c0_i32, %arg1 : i32, i32, i32
  }
  func.func @transform_2(%arg0: i32, %arg1: i32) -> (i32, i32, i32) {
    %c0_i32 = arith.constant 0 : i32
    %c0_i32_0 = arith.constant 0 : i32
    %c0_i32_1 = arith.constant 0 : i32
    return %arg0, %c0_i32, %c0_i32_0 : i32, i32, i32
  }
}

</mosaic_0001>

<llo_original>
// kernel: tpu_custom_call.1
$region0: #{tpu_custom_call.1}
  #allocation0 [shape = 'u32[]', space=smem, size = 0x4, offset = 0x4, fixed_abs, tag = 'smem constant byte address 0x4 - core index']
  #allocation1 [shape = 'u32[72,128]{1,0:T(1,128)}', space=vmem, size = 0x9000, scoped, tag = 'internal scratch']
  #allocation2 [shape = 'f32[1,3,5]{2,1,0:T(4,128)}', space=vmem, size = 0x800, scoped, tag = 'scratch operand']
  %s0 = inlined_call_operand.vmem [shape: f32[2,3,500], index: 0, kind: input, shape index: {}]
  %s1 = inlined_call_operand.vmem [shape: f32[2,3,500], index: 1, kind: input, shape index: {}]
  %s2 = inlined_call_operand.vmem [shape: f32[2,3,128], index: 2, kind: output, shape index: {}]
  %s3 = sld [smem:[#allocation0]]
  $region49: #{tpu_custom_call.1} parent=0
    _
  %s5 = ssub.s32 1, %s3
  %s6 = scalar_select 0, %s5, %s3
  loop: start=0, step=1, limit=4
  $region2: #{tpu_custom_call.1} parent=0 // loop_pre_header
    _
  $region3: #{tpu_custom_call.1} parent=0 // loop_header
    %s8 = sphi 0, %s12
    %p9 = scmp.ge.s32.totalorder %s8, 4
    %s15 = sphi 0, %s27
    %s16 = sphi 0, %s23
    %s17 = sphi 0, %s15
    %s18 = sphi 0, %s16
    %s19 = sphi 0, %s17
    %s20 = sphi 0, %s18
    %s32 = sphi 0, %s34
    %s35 = sphi 0, %s32
    %s36 = sphi 0, %s35
    %s52 = sphi 0, %s36
    %s60 = sphi 0, %s62
    %s63 = sphi 0, %s60
    %s64 = sphi 0, %s63
    %s80 = sphi 0, %s64
    %s86 = sphi 0, %s88
    %s89 = sphi 0, %s86
    %s90 = sphi 0, %s89
    %s106 = sphi 0, %s90
  $region4: #{tpu_custom_call.1} parent=0 // loop_header_branch
    %11 = sbr.rel (%p9) target = $region8
  $region5: #{tpu_custom_call.1} parent=0 // loop_body
    %s13 = ssub.s32 %s8, 1
    %s14 = ssub.s32 %s8, 2
    %s21 = sadd.s32 1, %s16
    %p22 = scmp.ge.s32.totalorder %s21, 1
    %s23 = scalar_select %p22, 0, %s21
    %s24 = sadd.s32 1, %s15
    %s25 = scalar_select %p22, %s24, %s15
    %p26 = scmp.ge.s32.totalorder %s25, 2
    %s27 = scalar_select %p26, 0, %s25
    %s28 = ssub.s32 %s15, %s27
    %s29 = ssub.s32 %s16, %s23
    %s30 = sor.u32 %s28, %s29
    %p31 = scmp.eq.s32.totalorder %s30, 0
    %s33 = sadd.s32 %s32, 1
    %s34 = scalar_select %p31, %s32, %s33
    %p37 = pneg %p31
    %p38 = scmp.eq.s32.totalorder %s8, 1
    %p39 = por %p37, %p38
    %p40 = scmp.ne.s32.totalorder %s32, %s35
    %p41 = scmp.eq.s32.totalorder %s8, 0
    %p42 = por %p40, %p41
    %p43 = scmp.ne.s32.totalorder %s32, %s35
    %p44 = scmp.eq.s32.totalorder %s13, 1
    %p45 = por %p43, %p44
    %p46 = scmp.ne.s32.totalorder %s35, %s36
    %p47 = scmp.eq.s32.totalorder %s13, 0
    %p48 = por %p46, %p47
    %p49 = scmp.ne.s32.totalorder %s35, %s36
    %p50 = scmp.eq.s32.totalorder %s14, 1
    %p51 = por %p49, %p50
    %p53 = scmp.ne.s32.totalorder %s36, %s52
    %p54 = scmp.eq.s32.totalorder %s14, 0
    %p55 = por %p53, %p54
    %s56 = ssub.s32 %s15, %s27
    %s57 = ssub.s32 %s16, %s23
    %s58 = sor.u32 %s56, %s57
    %p59 = scmp.eq.s32.totalorder %s58, 0
    %s61 = sadd.s32 %s60, 1
    %s62 = scalar_select %p59, %s60, %s61
    %p65 = pneg %p59
    %p66 = scmp.eq.s32.totalorder %s8, 1
    %p67 = por %p65, %p66
    %p68 = scmp.ne.s32.totalorder %s60, %s63
    %p69 = scmp.eq.s32.totalorder %s8, 0
    %p70 = por %p68, %p69
    %p71 = scmp.ne.s32.totalorder %s60, %s63
    %p72 = scmp.eq.s32.totalorder %s13, 1
    %p73 = por %p71, %p72
    %p74 = scmp.ne.s32.totalorder %s63, %s64
    %p75 = scmp.eq.s32.totalorder %s13, 0
    %p76 = por %p74, %p75
    %p77 = scmp.ne.s32.totalorder %s63, %s64
    %p78 = scmp.eq.s32.totalorder %s14, 1
    %p79 = por %p77, %p78
    %p81 = scmp.ne.s32.totalorder %s64, %s80
    %p82 = scmp.eq.s32.totalorder %s14, 0
    %p83 = por %p81, %p82
    %s84 = ssub.s32 %s15, %s27
    %p85 = scmp.eq.s32.totalorder %s84, 0
    %s87 = sadd.s32 %s86, 1
    %s88 = scalar_select %p85, %s86, %s87
    %p91 = pneg %p85
    %p92 = scmp.eq.s32.totalorder %s8, 1
    %p93 = por %p91, %p92
    %p94 = scmp.ne.s32.totalorder %s86, %s89
    %p95 = scmp.eq.s32.totalorder %s8, 0
    %p96 = por %p94, %p95
    %p97 = scmp.ne.s32.totalorder %s86, %s89
    %p98 = scmp.eq.s32.totalorder %s13, 1
    %p99 = por %p97, %p98
    %p100 = scmp.ne.s32.totalorder %s89, %s90
    %p101 = scmp.eq.s32.totalorder %s13, 0
    %p102 = por %p100, %p101
    %p103 = scmp.ne.s32.totalorder %s89, %s90
    %p104 = scmp.eq.s32.totalorder %s14, 1
    %p105 = por %p103, %p104
    %p107 = scmp.ne.s32.totalorder %s90, %s106
    %p108 = scmp.eq.s32.totalorder %s14, 0
    %p109 = por %p107, %p108
    %p110 = scmp.le.s32.totalorder 1, %s8
    %p111 = scmp.lt.s32.totalorder %s8, 3
    %p112 = pnand %p110, %p111
    %p113 = pneg %p112
    // Predicated region
    $region9: #{tpu_custom_call.1} parent=5 // pred_check
      _
    $region10: #{tpu_custom_call.1} parent=5 // pred_check_branch
      %115 = sbr.rel (%p112) target = $region12
    $region11: #{tpu_custom_call.1} parent=5 // pred_region
      %s116 = ssub.s32 %s8, 1
    $region12: #{tpu_custom_call.1} parent=5 // pred_fallthru
      _
    %p117 = scmp.lt.s32.totalorder %s8, 2
    // Predicated region
    $region13: #{tpu_custom_call.1} parent=5 // pred_check
      %p118 = pneg %p117
    $region14: #{tpu_custom_call.1} parent=5 // pred_check_branch
      %120 = sbr.rel (%p118) target = $region16
    $region15: #{tpu_custom_call.1} parent=5 // pred_region
      // Predicated region
      $region17: #{tpu_custom_call.1} parent=15 // pred_check
        %p121 = pneg %p42
      $region18: #{tpu_custom_call.1} parent=15 // pred_check_branch
        %123 = sbr.rel (%p121) target = $region20
      $region19: #{tpu_custom_call.1} parent=15 // pred_region
        %s124 = smul.u32 4, %s16
        %p125 = scmp.lt.s32.totalorder %s15, 1
        %s126 = scalar_select %p125, %s15, 1
        %p127 = scmp.lt.s32.totalorder %s124, 3
        %s128 = scalar_select %p127, %s124, 3
        %s129 = smul.addr %s126, 4
        %s130 = sadd.s32 %s128, %s129
        %s131 = smul.addr %s130, 4
        %s132 = scalar_lea.vmem %s0, %s131
        %s133 = smul.u32 4, %s16
      $region20: #{tpu_custom_call.1} parent=15 // pred_fallthru
        _
      // Predicated region
      $region21: #{tpu_custom_call.1} parent=15 // pred_check
        %p134 = pneg %p70
      $region22: #{tpu_custom_call.1} parent=15 // pred_check_branch
        %136 = sbr.rel (%p134) target = $region24
      $region23: #{tpu_custom_call.1} parent=15 // pred_region
        %s137 = smul.u32 4, %s16
        %p138 = scmp.lt.s32.totalorder %s15, 1
        %s139 = scalar_select %p138, %s15, 1
        %p140 = scmp.lt.s32.totalorder %s137, 3
        %s141 = scalar_select %p140, %s137, 3
        %s142 = smul.addr %s139, 4
        %s143 = sadd.s32 %s141, %s142
        %s144 = smul.addr %s143, 4
        %s145 = scalar_lea.vmem %s1, %s144
        %s146 = smul.u32 4, %s16
      $region24: #{tpu_custom_call.1} parent=15 // pred_fallthru
        _
    $region16: #{tpu_custom_call.1} parent=5 // pred_fallthru
      _
    %p147 = scmp.le.s32.totalorder 1, %s8
    %p148 = scmp.lt.s32.totalorder %s8, 3
    %p149 = pnand %p147, %p148
    %p150 = pneg %p149
    // Predicated region
    $region25: #{tpu_custom_call.1} parent=5 // pred_check
      _
    $region26: #{tpu_custom_call.1} parent=5 // pred_check_branch
      %152 = sbr.rel (%p149) target = $region28
    $region27: #{tpu_custom_call.1} parent=5 // pred_region
      %s153 = ssub.s32 %s8, 1
      %s154 = smul.u32 4, %s18
      %p155 = scmp.lt.s32.totalorder %s17, 1
      %s156 = scalar_select %p155, %s17, 1
      %p157 = scmp.lt.s32.totalorder %s154, 3
      %s158 = scalar_select %p157, %s154, 3
      %s159 = smul.addr %s156, 4
      %s160 = sadd.s32 %s158, %s159
      %s161 = smul.addr %s160, 4
      %s162 = scalar_lea.vmem %s0, %s161
      %p163 = pneg %p48
      %p164 = pneg %p45
      %s165 = smul.u32 4, %s18
      %p166 = scmp.lt.s32.totalorder %s17, 1
      %s167 = scalar_select %p166, %s17, 1
      %p168 = scmp.lt.s32.totalorder %s165, 3
      %s169 = scalar_select %p168, %s165, 3
      %s170 = smul.addr %s167, 4
      %s171 = sadd.s32 %s169, %s170
      %s172 = smul.addr %s171, 4
      %s173 = scalar_lea.vmem %s1, %s172
      %p174 = pneg %p76
      %p175 = pneg %p73
      %p176 = pneg %p102
      %p177 = pneg %p99
      %p178 = scmp.lt.s32.totalorder %s17, 1
      %s179 = scalar_select %p178, %s17, 1
      %s180 = smul.addr %s179, 4
      %s181 = scalar_lea.vmem %s2, %s180
      %s182 = smul.u32 4, %s18
      %p183 = scmp.lt.s32.totalorder %s17, 1
      %s184 = scalar_select %p183, %s17, 1
      %p185 = scmp.lt.s32.totalorder %s182, 3
      %s186 = scalar_select %p185, %s182, 3
      %s187 = smul.addr %s184, 4
      %s188 = sadd.s32 %s186, %s187
      %s189 = smul.addr %s188, 4
      %s190 = scalar_lea.vmem %s0, %s189
      %s191 = smul.u32 4, %s18
      %s192 = smul.u32 4, %s18
      %p193 = scmp.lt.s32.totalorder %s17, 1
      %s194 = scalar_select %p193, %s17, 1
      %p195 = scmp.lt.s32.totalorder %s192, 3
      %s196 = scalar_select %p195, %s192, 3
      %s197 = smul.addr %s194, 4
      %s198 = sadd.s32 %s196, %s197
      %s199 = smul.addr %s198, 4
      %s200 = scalar_lea.vmem %s1, %s199
      %s201 = smul.u32 4, %s18
      %p202 = scmp.lt.s32.totalorder %s17, 1
      %s203 = scalar_select %p202, %s17, 1
      %s204 = smul.addr %s203, 4
      %s205 = scalar_lea.vmem %s2, %s204
      %p206 = scmp.eq.s32.totalorder %s18, 0
      // Predicated region
      $region29: #{tpu_custom_call.1} parent=27 // pred_check
        %p207 = pneg %p206
      $region30: #{tpu_custom_call.1} parent=27 // pred_check_branch
        %209 = sbr.rel (%p207) target = $region32
      $region31: #{tpu_custom_call.1} parent=27 // pred_region
        %vm210 = vcmask 34816
        %211 = vst.msk [vmem:[#allocation2] sm:$0x7] %vm210, 0.0
      $region32: #{tpu_custom_call.1} parent=27 // pred_fallthru
        _
      %v212 = vld [vmem:[%s190] sm:$0x77]
      %v213 = vld [vmem:[%s190 + $0x8] sm:$0x77]
      %v214 = vld [vmem:[%s200] sm:$0x77]
      %v215 = vld [vmem:[%s200 + $0x8] sm:$0x77]
      %v216 = vlaneseq
      %v217 = vand.u32 %v216, 127
      %v218 = vadd.s32 %v217, 128
      %v219 = vadd.s32 %v217, 256
      %v220 = vadd.s32 %v217, 384
      %s221 = smul.u32 %s18, 512
      %s222 = ssub.s32 500, %s221
      %v223 = vstv %s222
      %vm224 = vcmp.lt.s32.totalorder %v217, %v223
      %vm225 = vcmp.lt.s32.totalorder %v218, %v223
      %vm226 = vcmp.lt.s32.totalorder %v219, %v223
      %vm227 = vcmp.lt.s32.totalorder %v220, %v223
      %v228 = vsel %vm224, 1, 0
      %v229 = vsel %vm225, 1, 0
      %v230 = vsel %vm226, 1, 0
      %v231 = vsel %vm227, 1, 0
      %vm232 = vcmp.eq.s32.totalorder %v228, 1
      %vm233 = vcmp.eq.s32.totalorder %v229, 1
      %vm234 = vcmp.eq.s32.totalorder %v230, 1
      %vm235 = vcmp.eq.s32.totalorder %v231, 1
      %238 = vst [vmem:[#allocation1] ss:$2 sm:$0xff] %v212
      %s239 = scalar_lea.vmem [#allocation1], 16
      %240 = vst [vmem:[%s239] ss:$2 sm:$0xff] %v213
      %v241 = vld.sshfl [vmem:[#allocation1] sm:$0xff pattern:$0x75316420]
      %v242 = vld.sshfl [vmem:[#allocation1 + $0x8] sm:$0xff pattern:$0x75316420]
      %v243 = vld.sshfl [vmem:[#allocation1 + $0x10] sm:$0xff pattern:$0x75316420]
      %v244 = vld.sshfl [vmem:[#allocation1 + $0x18] sm:$0xff pattern:$0x75316420]
      %v249 = vsel %vm232, %v241, 0.0
      %v250 = vsel %vm233, %v242, 0.0
      %v251 = vsel %vm234, %v243, 0.0
      %v252 = vsel %vm235, %v244, 0.0
      %255 = vst [vmem:[#allocation1] ss:$2 sm:$0xff] %v214
      %s256 = scalar_lea.vmem [#allocation1], 16
      %257 = vst [vmem:[%s256] ss:$2 sm:$0xff] %v215
      %v258 = vld.sshfl [vmem:[#allocation1] sm:$0xff pattern:$0x75316420]
      %v259 = vld.sshfl [vmem:[#allocation1 + $0x8] sm:$0xff pattern:$0x75316420]
      %v260 = vld.sshfl [vmem:[#allocation1 + $0x10] sm:$0xff pattern:$0x75316420]
      %v261 = vld.sshfl [vmem:[#allocation1 + $0x18] sm:$0xff pattern:$0x75316420]
      %v266 = vsel %vm232, %v258, 0.0
      %v267 = vsel %vm233, %v259, 0.0
      %v268 = vsel %vm234, %v260, 0.0
      %v269 = vsel %vm235, %v261, 0.0
      %v270 = vperm.slane %v266, 0
      %v271 = vperm.slane %v267, 0
      %v272 = vperm.slane %v268, 0
      %v273 = vperm.slane %v269, 0
      %v274 = vmul.f32 %v249, %v270
      %v275 = vmul.f32 %v250, %v271
      %v276 = vmul.f32 %v251, %v272
      %v277 = vmul.f32 %v252, %v273
      %vm278 = vcmask 1042432
      %v279 = vsel %vm278, %v274, 0.0
      %v280 = vsel %vm278, %v275, 0.0
      %v281 = vadd.f32 %v279, %v280
      %v282 = vsel %vm278, %v276, 0.0
      %v283 = vadd.f32 %v281, %v282
      %v284 = vsel %vm278, %v277, 0.0
      %v285 = vadd.f32 %v283, %v284
      %286 = vadd.xlane.f32.xlu0 %v285
      %v287 = vpop.xlane.xlu0 %286
      %v288 = vperm.slane %v266, 1
      %v289 = vperm.slane %v267, 1
      %v290 = vperm.slane %v268, 1
      %v291 = vperm.slane %v269, 1
      %v292 = vmul.f32 %v249, %v288
      %v293 = vmul.f32 %v250, %v289
      %v294 = vmul.f32 %v251, %v290
      %v295 = vmul.f32 %v252, %v291
      %v296 = vsel %vm278, %v292, 0.0
      %v297 = vsel %vm278, %v293, 0.0
      %v298 = vadd.f32 %v296, %v297
      %v299 = vsel %vm278, %v294, 0.0
      %v300 = vadd.f32 %v298, %v299
      %v301 = vsel %vm278, %v295, 0.0
      %v302 = vadd.f32 %v300, %v301
      %303 = vadd.xlane.f32.xlu0 %v302
      %v304 = vpop.xlane.xlu0 %303
      %v305 = vperm.slane %v266, 2
      %v306 = vperm.slane %v267, 2
      %v307 = vperm.slane %v268, 2
      %v308 = vperm.slane %v269, 2
      %v309 = vmul.f32 %v249, %v305
      %v310 = vmul.f32 %v250, %v306
      %v311 = vmul.f32 %v251, %v307
      %v312 = vmul.f32 %v252, %v308
      %v313 = vsel %vm278, %v309, 0.0
      %v314 = vsel %vm278, %v310, 0.0
      %v315 = vadd.f32 %v313, %v314
      %v316 = vsel %vm278, %v311, 0.0
      %v317 = vadd.f32 %v315, %v316
      %v318 = vsel %vm278, %v312, 0.0
      %v319 = vadd.f32 %v317, %v318
      %320 = vadd.xlane.f32.xlu0 %v319
      %v321 = vpop.xlane.xlu0 %320
      %v322 = vmul.f32 %v249, %v249
      %v323 = vmul.f32 %v250, %v250
      %v324 = vmul.f32 %v251, %v251
      %v325 = vmul.f32 %v252, %v252
      %v326 = vsel %vm278, %v322, 0.0
      %v327 = vsel %vm278, %v323, 0.0
      %v328 = vadd.f32 %v326, %v327
      %v329 = vsel %vm278, %v324, 0.0
      %v330 = vadd.f32 %v328, %v329
      %v331 = vsel %vm278, %v325, 0.0
      %v332 = vadd.f32 %v330, %v331
      %333 = vadd.xlane.f32.xlu0 %v332
      %v334 = vpop.xlane.xlu0 %333
      %v335 = vmul.f32 %v266, %v266
      %v336 = vmul.f32 %v267, %v267
      %v337 = vmul.f32 %v268, %v268
      %v338 = vmul.f32 %v269, %v269
      %v339 = vsel %vm278, %v335, 0.0
      %v340 = vsel %vm278, %v336, 0.0
      %v341 = vadd.f32 %v339, %v340
      %v342 = vsel %vm278, %v337, 0.0
      %v343 = vadd.f32 %v341, %v342
      %v344 = vsel %vm278, %v338, 0.0
      %v345 = vadd.f32 %v343, %v344
      %346 = vadd.xlane.f32.xlu0 %v345
      %v347 = vpop.xlane.xlu0 %346
      %v348 = vld [vmem:[#allocation2] sm:$0x7]
      %vm349 = vcmask 7168
      %v350 = vsel %vm349, %v287, %v304
      %vm351 = vcmask 15360
      %v352 = vsel %vm351, %v350, %v321
      %vm353 = vcmask 23552
      %v354 = vsel %vm353, %v352, %v334
      %vm355 = vcmask 31744
      %v356 = vsel %vm355, %v354, %v347
      %v357 = vadd.f32 %v348, %v356
      %vm358 = vcmask 34816
      %359 = vst.msk [vmem:[#allocation2] sm:$0x7] %vm358, %v357
      // Predicated region
      $region33: #{tpu_custom_call.1} parent=27 // pred_check
        %p360 = pneg %p206
      $region34: #{tpu_custom_call.1} parent=27 // pred_check_branch
        %362 = sbr.rel (%p360) target = $region36
      $region35: #{tpu_custom_call.1} parent=27 // pred_region
        %v363 = vld [vmem:[#allocation2] sm:$0x7]
        %v364 = vadd.f32 %v363, 1e-09
        %v365 = vrcp.pop %v364
        %v366 = vmul.f32 %v364, %v365
        %v367 = vsub.f32 1.0, %v366
        %v368 = vmul.f32 %v365, %v367
        %v369 = vadd.f32 %v365, %v368
        %vm370 = vweird.f32 %v364
        %vm371 = vweird.f32 %v365
        %vm372 = vmor %vm370, %vm371
        %v373 = vsel %vm372, %v365, %v369
        %v374 = vand.u32 2147483647, %v364
        %vm375 = vcmp.eq.f32.partialorder %v374, 8.507059e+37
        %v376 = vand.u32 %v364, 2147483648
        %v377 = vor.u32 1.1754944e-38, %v376
        %v378 = vsel %vm375, %v377, %v373
        %v379 = vmul.f32 1.0, %v378
        %v380 = vmul.f32 %v363, %v363
        %v381 = vperm.slane %v363, 0
        %383 = vrot.lane.b32.xlu0 %v381, 124
        %v384 = vpop.permute.xlu0 %383
        %v386 = vmul.f32 %v380, %v384
        %v387 = vmul.f32 %v379, %v379
        %v388 = vperm.slane %v387, 0
        %390 = vrot.lane.b32.xlu0 %v388, 124
        %v391 = vpop.permute.xlu0 %390
        %v393 = vmul.f32 %v386, %v391
        %v394 = vmul.f32 %v380, 2.0
        %v395 = vperm.slane %v379, 0
        %397 = vrot.lane.b32.xlu0 %v395, 124
        %v398 = vpop.permute.xlu0 %397
        %v400 = vmul.f32 %v394, %v398
        %402 = vrot.lane.b32.xlu0 %v400, 3
        %v403 = vpop.permute.xlu0 %402
        %v405 = vsub.f32 %v363, %v403
        %407 = vrot.lane.b32.xlu0 %v393, 3
        %v408 = vpop.permute.xlu0 %407
        %v410 = vadd.f32 %v405, %v408
        %v411 = vmax.f32 %v410, 0.0
        %v412 = vadd.f32 %v411, 1e-09
        %414 = vrot.lane.b32.xlu0 %v412, 125
        %v415 = vpop.permute.xlu0 %414
        %v417 = vrcp.pop %v415
        %v418 = vmul.f32 %v415, %v417
        %v419 = vsub.f32 1.0, %v418
        %v420 = vmul.f32 %v417, %v419
        %v421 = vadd.f32 %v417, %v420
        %vm422 = vweird.f32 %v415
        %vm423 = vweird.f32 %v417
        %vm424 = vmor %vm422, %vm423
        %v425 = vsel %vm424, %v417, %v421
        %v426 = vand.u32 2147483647, %v415
        %vm427 = vcmp.eq.f32.partialorder %v426, 8.507059e+37
        %v428 = vand.u32 %v415, 2147483648
        %v429 = vor.u32 1.1754944e-38, %v428
        %v430 = vsel %vm427, %v429, %v425
        %v431 = vmul.f32 %v393, %v430
        %v432 = vlog2.pop %v431
        %v433 = vmul.f32 %v432, 0.6931472
        %v434 = vmul.f32 %v433, 0.4342945
        %v435 = vmul.f32 %v434, 10.0
        %v436 = vperm.slane %v363, 1
        %438 = vrot.lane.b32.xlu0 %v436, 125
        %v439 = vpop.permute.xlu0 %438
        %v441 = vmul.f32 %v380, %v439
        %v442 = vperm.slane %v387, 1
        %444 = vrot.lane.b32.xlu0 %v442, 125
        %v445 = vpop.permute.xlu0 %444
        %v447 = vmul.f32 %v441, %v445
        %v448 = vperm.slane %v379, 1
        %450 = vrot.lane.b32.xlu0 %v448, 125
        %v451 = vpop.permute.xlu0 %450
        %v453 = vmul.f32 %v394, %v451
        %455 = vrot.lane.b32.xlu0 %v453, 2
        %v456 = vpop.permute.xlu0 %455
        %v458 = vsub.f32 %v363, %v456
        %460 = vrot.lane.b32.xlu0 %v447, 2
        %v461 = vpop.permute.xlu0 %460
        %v463 = vadd.f32 %v458, %v461
        %v464 = vmax.f32 %v463, 0.0
        %v465 = vadd.f32 %v464, 1e-09
        %467 = vrot.lane.b32.xlu0 %v465, 126
        %v468 = vpop.permute.xlu0 %467
        %v470 = vrcp.pop %v468
        %v471 = vmul.f32 %v468, %v470
        %v472 = vsub.f32 1.0, %v471
        %v473 = vmul.f32 %v470, %v472
        %v474 = vadd.f32 %v470, %v473
        %vm475 = vweird.f32 %v468
        %vm476 = vweird.f32 %v470
        %vm477 = vmor %vm475, %vm476
        %v478 = vsel %vm477, %v470, %v474
        %v479 = vand.u32 2147483647, %v468
        %vm480 = vcmp.eq.f32.partialorder %v479, 8.507059e+37
        %v481 = vand.u32 %v468, 2147483648
        %v482 = vor.u32 1.1754944e-38, %v481
        %v483 = vsel %vm480, %v482, %v478
        %v484 = vmul.f32 %v447, %v483
        %v485 = vlog2.pop %v484
        %v486 = vmul.f32 %v485, 0.6931472
        %v487 = vmul.f32 %v486, 0.4342945
        %v488 = vmul.f32 %v487, 10.0
        %v489 = vperm.slane %v363, 2
        %491 = vrot.lane.b32.xlu0 %v489, 126
        %v492 = vpop.permute.xlu0 %491
        %v494 = vmul.f32 %v380, %v492
        %v495 = vperm.slane %v387, 2
        %497 = vrot.lane.b32.xlu0 %v495, 126
        %v498 = vpop.permute.xlu0 %497
        %v500 = vmul.f32 %v494, %v498
        %v501 = vperm.slane %v379, 2
        %503 = vrot.lane.b32.xlu0 %v501, 126
        %v504 = vpop.permute.xlu0 %503
        %v506 = vmul.f32 %v394, %v504
        %508 = vrot.lane.b32.xlu0 %v506, 1
        %v509 = vpop.permute.xlu0 %508
        %v511 = vsub.f32 %v363, %v509
        %513 = vrot.lane.b32.xlu0 %v500, 1
        %v514 = vpop.permute.xlu0 %513
        %v516 = vadd.f32 %v511, %v514
        %v517 = vmax.f32 %v516, 0.0
        %v518 = vadd.f32 %v517, 1e-09
        %520 = vrot.lane.b32.xlu0 %v518, 127
        %v521 = vpop.permute.xlu0 %520
        %v523 = vrcp.pop %v521
        %v524 = vmul.f32 %v521, %v523
        %v525 = vsub.f32 1.0, %v524
        %v526 = vmul.f32 %v523, %v525
        %v527 = vadd.f32 %v523, %v526
        %vm528 = vweird.f32 %v521
        %vm529 = vweird.f32 %v523
        %vm530 = vmor %vm528, %vm529
        %v531 = vsel %vm530, %v523, %v527
        %v532 = vand.u32 2147483647, %v521
        %vm533 = vcmp.eq.f32.partialorder %v532, 8.507059e+37
        %v534 = vand.u32 %v521, 2147483648
        %v535 = vor.u32 1.1754944e-38, %v534
        %v536 = vsel %vm533, %v535, %v531
        %v537 = vmul.f32 %v500, %v536
        %v538 = vlog2.pop %v537
        %v539 = vmul.f32 %v538, 0.6931472
        %v540 = vmul.f32 %v539, 0.4342945
        %v541 = vmul.f32 %v540, 10.0
        %v542 = vsel %vm349, %v435, %v488
        %v543 = vsel %vm351, %v542, %v541
        %v544 = vsel %vm353, %v543, 0.0
        %545 = vst [vmem:[%s205] sm:$0x7] %v544
      $region36: #{tpu_custom_call.1} parent=27 // pred_fallthru
        _
      %p546 = scmp.lt.s32.totalorder %s17, 1
      %s547 = scalar_select %p546, %s17, 1
      %s548 = smul.addr %s547, 4
      %s549 = scalar_lea.vmem %s2, %s548
      // Predicated region
      $region37: #{tpu_custom_call.1} parent=27 // pred_check
        %p550 = pneg %p99
      $region38: #{tpu_custom_call.1} parent=27 // pred_check_branch
        %552 = sbr.rel (%p550) target = $region40
      $region39: #{tpu_custom_call.1} parent=27 // pred_region
        _
      $region40: #{tpu_custom_call.1} parent=27 // pred_fallthru
        _
    $region28: #{tpu_custom_call.1} parent=5 // pred_fallthru
      _
    %p553 = scmp.le.s32.totalorder 2, %s8
    // Predicated region
    $region41: #{tpu_custom_call.1} parent=5 // pred_check
      %p554 = pneg %p553
    $region42: #{tpu_custom_call.1} parent=5 // pred_check_branch
      %556 = sbr.rel (%p554) target = $region44
    $region43: #{tpu_custom_call.1} parent=5 // pred_region
      %s557 = ssub.s32 %s8, 2
      // Predicated region
      $region45: #{tpu_custom_call.1} parent=43 // pred_check
        %p558 = pneg %p105
      $region46: #{tpu_custom_call.1} parent=43 // pred_check_branch
        %560 = sbr.rel (%p558) target = $region48
      $region47: #{tpu_custom_call.1} parent=43 // pred_region
        %p561 = scmp.lt.s32.totalorder %s19, 1
        %s562 = scalar_select %p561, %s19, 1
        %s563 = smul.addr %s562, 4
        %s564 = scalar_lea.vmem %s2, %s563
      $region48: #{tpu_custom_call.1} parent=43 // pred_fallthru
        _
    $region44: #{tpu_custom_call.1} parent=5 // pred_fallthru
      _
  $region6: #{tpu_custom_call.1} parent=0 // loop_footer
    %s12 = sadd.s32 1, %s8
  $region7: #{tpu_custom_call.1} parent=0 // loop_footer_branch
    %7 = sbr.rel target = $region3
  $region8: #{tpu_custom_call.1} parent=0 // loop_exit
    _

</llo_original>
